<compile_context>
chip_gen: v7x
topology: tpu7x:2x2x1
jax: 0.10.0
libtpu: 0.0.40
codegen_flags: <defaults>
</compile_context>

<pallas_src>
import functools
import math

import jax
import jax.numpy as jnp
from jax.experimental import pallas as pl
from jax.experimental.pallas import tpu as pltpu


def _pe_add_kernel(x_ref, pe_ref, o_ref, *, batch, d_model):
    """x_ref/o_ref: (TS, B*D) lane-folded blocks; pe_ref: (TS, D).

    The positional table is broadcast across the folded batch axis by adding
    it to each D-wide lane chunk separately — no (TS, B*D) temporary is ever
    materialized in VMEM, and the extra vld/vst per chunk is free filler on an
    HBM-bound kernel (lane-dense when D % 128 == 0).
    """
    pe = pe_ref[...]
    if batch == 1:
        o_ref[...] = (x_ref[...] + pe).astype(o_ref.dtype)
    else:
        for b in range(batch):  # static unroll; batch is a compile-time constant
            lo = b * d_model
            o_ref[:, lo:lo + d_model] = (
                x_ref[:, lo:lo + d_model] + pe
            ).astype(o_ref.dtype)


def make_positional_encoding_table(d_model, max_len=5000, dtype=jnp.float32):
    """Deterministic sinusoidal table, identical to the PyTorch buffer `pe`."""
    position = jnp.arange(0, max_len, dtype=jnp.float32)[:, None]          # (max_len, 1)
    div_term = jnp.exp(
        jnp.arange(0, d_model, 2, dtype=jnp.float32) * (-math.log(10000.0) / d_model)
    )
    pe = jnp.zeros((max_len, d_model), dtype=jnp.float32)
    pe = pe.at[:, 0::2].set(jnp.sin(position * div_term))
    pe = pe.at[:, 1::2].set(jnp.cos(position * div_term)[:, : d_model // 2])
    pe = pe[:, None, :]                                                     # (max_len, 1, D)
    return pe.astype(dtype)


def _choose_tile_s(S, BD, D, itemsize):
    """Largest S-tile with ~20 MiB of double-buffered live blocks, capped so
    the grid has >=2 (ideally >=4) tiles when S allows.

    Live per step = x tile + out tile (BD wide) + pe tile (D wide), each
    double-buffered by the Pallas pipeline. There is no in-kernel temporary
    (chunked add), so this accounting is exact. 20 MiB fits every generation
    once vmem_limit_bytes is raised (v5e/v6e: 128 MiB phys; v7x: 64 MiB/TC).
    """
    bytes_per_row = 2 * (2 * BD + D) * itemsize
    budget = 20 * 1024 * 1024
    ts = budget // max(bytes_per_row, 1)

    # Sublane packing multiple: 8 rows/vreg for 32-bit, 16 for bf16, 32 for 8-bit.
    if itemsize >= 4:
        mult = 8
    elif itemsize == 2:
        mult = 16
    else:
        mult = 32
    ts = max(mult, (ts // mult) * mult)

    # Keep both v7x TensorCores busy and give the pipeline >=2 steps per core.
    if S >= 4 * mult:
        want_tiles = 4
    elif S >= 2 * mult:
        want_tiles = 2
    else:
        want_tiles = 1
    if want_tiles > 1:
        per_tile = -(-S // want_tiles)                       # ceil(S / want_tiles)
        per_tile = ((per_tile + mult - 1) // mult) * mult    # round up to sublane pack
        ts = min(ts, per_tile)

    return min(ts, S)


def positional_encoding_forward(x, pe, *, donate_x=False):
    """x: (S, B, D); pe: (max_len, 1, D). Returns x + pe[:S] (dropout = identity)."""
    S, B, D = x.shape
    max_len = pe.shape[0]
    assert S <= max_len, f"sequence length {S} exceeds positional table max_len {max_len}"
    BD = B * D
    itemsize = jnp.dtype(x.dtype).itemsize

    # Lane-dense view: fold batch into the last dim so stores use as many
    # lanes as possible (full/unmasked vst when B*D is a multiple of 128).
    x2 = x.reshape(S, BD)
    pe2 = pe.reshape(max_len, D)

    ts = _choose_tile_s(S, BD, D, itemsize)

    # The pe block first dim must be divisible by 8 or equal pe2's full first
    # dim. When ts == S and S is ragged (< 8 / not a multiple of 8), window
    # the table down to exactly S rows so "full dim" applies. A dtype cast
    # (bf16 x vs f32 table) is likewise applied only to the S rows used,
    # never to the whole (max_len, D) buffer.
    needs_cast = pe2.dtype != x.dtype
    block_ok = (ts % 8 == 0) or (ts == S == max_len)
    if needs_cast or not block_ok:
        pe2 = jax.lax.slice(pe2, (0, 0), (S, D)).astype(x.dtype)

    grid = (pl.cdiv(S, ts),)

    cost = pl.CostEstimate(
        flops=S * BD,
        transcendentals=0,
        bytes_accessed=(2 * S * BD + S * D) * itemsize,
    )

    out = pl.pallas_call(
        functools.partial(_pe_add_kernel, batch=B, d_model=D),
        out_shape=jax.ShapeDtypeStruct((S, BD), x.dtype),
        grid=grid,
        in_specs=[
            pl.BlockSpec((ts, BD), lambda i: (i, 0)),   # x tile
            pl.BlockSpec((ts, D), lambda i: (i, 0)),    # pe rows [i*ts, i*ts+ts)
        ],
        out_specs=pl.BlockSpec((ts, BD), lambda i: (i, 0)),
        compiler_params=pltpu.CompilerParams(
            dimension_semantics=("parallel",),          # shard S-tiles across TCs on v7x
            vmem_limit_bytes=48 << 20,                  # above v5e's 16 MiB scoped default
        ),
        cost_estimate=cost,
        input_output_aliases={0: 0} if donate_x else {},
    )(x2, pe2)

    return out.reshape(S, B, D)


if __name__ == "__main__":
    # Small shapes consistent with the transformer usage: (seq, batch, d_model)
    S, B, D = 8, 2, 32
    MAX_LEN = 64  # keep the buffer small for the test (module default is 5000)

    key = jax.random.PRNGKey(0)
    x = jax.random.normal(key, (S, B, D), dtype=jnp.float32)

    pe = make_positional_encoding_table(D, max_len=MAX_LEN, dtype=jnp.float32)

    fwd = jax.jit(positional_encoding_forward)
    out = jax.block_until_ready(fwd(x, pe))

    # Sanity check against plain-JAX reference.
    ref = x + pe[:S]
    assert out.shape == (S, B, D)
    assert jnp.allclose(out, ref, atol=1e-6, rtol=1e-6)

    print("KERNEL_OK")
</pallas_src>

<mosaic_0001>
module attributes {stable_mosaic.version = 11 : i64} {
  func.func @_pe_add_kernel(%arg0: i32, %arg1: memref<8x64xf32, #tpu.memory_space<vmem>>, %arg2: memref<8x32xf32, #tpu.memory_space<vmem>>, %arg3: memref<8x64xf32, #tpu.memory_space<vmem>>) attributes {dimension_semantics = [#tpu.dimension_semantics<parallel>], iteration_bounds = array<i64: 1>, scalar_prefetch = 0 : i64, scratch_operands = 0 : i64, tpu.core_type = #tpu.core_type<tc>, window_params = [{transform_indices = @transform_0, window_bounds = array<i64: 8, 64>}, {transform_indices = @transform_1, window_bounds = array<i64: 8, 32>}, {transform_indices = @transform_2, window_bounds = array<i64: 8, 64>}]} {
    %c0 = arith.constant 0 : index
    %c0_0 = arith.constant 0 : index
    %0 = vector.load %arg2[%c0, %c0_0] : memref<8x32xf32, #tpu.memory_space<vmem>>, vector<8x32xf32>
    %c0_1 = arith.constant 0 : index
    %c0_2 = arith.constant 0 : index
    %1 = vector.load %arg1[%c0_1, %c0_2] : memref<8x64xf32, #tpu.memory_space<vmem>>, vector<8x32xf32>
    %2 = arith.addf %1, %0 : vector<8x32xf32>
    %c0_3 = arith.constant 0 : index
    %c0_4 = arith.constant 0 : index
    %3 = vector.load %arg3[%c0_3, %c0_4] : memref<8x64xf32, #tpu.memory_space<vmem>>, vector<8x32xf32>
    tpu.vector_store %arg3[%c0_3, %c0_4], %2 {strides = array<i32>} : memref<8x64xf32, #tpu.memory_space<vmem>>, vector<8x32xf32>,
    %c0_5 = arith.constant 0 : index
    %c32 = arith.constant 32 : index
    %4 = vector.load %arg1[%c0_5, %c32] : memref<8x64xf32, #tpu.memory_space<vmem>>, vector<8x32xf32>
    %5 = arith.addf %4, %0 : vector<8x32xf32>
    %c0_6 = arith.constant 0 : index
    %c32_7 = arith.constant 32 : index
    %6 = vector.load %arg3[%c0_6, %c32_7] : memref<8x64xf32, #tpu.memory_space<vmem>>, vector<8x32xf32>
    tpu.vector_store %arg3[%c0_6, %c32_7], %5 {strides = array<i32>} : memref<8x64xf32, #tpu.memory_space<vmem>>, vector<8x32xf32>,
    return
  }
  func.func @transform_0(%arg0: i32) -> (i32, i32) {
    %c0_i32 = arith.constant 0 : i32
    %c0_i32_0 = arith.constant 0 : i32
    return %arg0, %c0_i32 : i32, i32
  }
  func.func @transform_1(%arg0: i32) -> (i32, i32) {
    %c0_i32 = arith.constant 0 : i32
    %c0_i32_0 = arith.constant 0 : i32
    return %arg0, %c0_i32 : i32, i32
  }
  func.func @transform_2(%arg0: i32) -> (i32, i32) {
    %c0_i32 = arith.constant 0 : i32
    %c0_i32_0 = arith.constant 0 : i32
    return %arg0, %c0_i32 : i32, i32
  }
}

</mosaic_0001>

<llo_original>
// kernel: positional_encoding_forward.1
$region0: #{positional_encoding_forward.1}
  #allocation0 [shape = 'u32[]', space=smem, size = 0x4, offset = 0x4, fixed_abs, tag = 'smem constant byte address 0x4 - core index']
  #allocation1 [shape = 'u32[144,128]{1,0:T(1,128)}', space=vmem, size = 0x12000, scoped, tag = 'internal scratch']
  %s0 = inlined_call_operand.vmem [shape: f32[8,64], index: 0, kind: input, shape index: {}]
  %s1 = inlined_call_operand.vmem [shape: f32[64,32], index: 1, kind: input, shape index: {}]
  %s2 = inlined_call_operand.vmem [shape: f32[8,64], index: 2, kind: output, shape index: {}]
  %s3 = sld [smem:[#allocation0]]
  $region18: #{positional_encoding_forward.1} parent=0
    _
  %s5 = ssub.s32 1, %s3
  %s6 = scalar_select 0, %s5, %s3
  // Predicated region
  $region2: #{positional_encoding_forward.1} parent=0 // pred_check
    _
  $region3: #{positional_encoding_forward.1} parent=0 // pred_check_branch
    %8 = sbr.rel (0) target = $region5
  $region4: #{positional_encoding_forward.1} parent=0 // pred_region
    _
  $region5: #{positional_encoding_forward.1} parent=0 // pred_fallthru
    _
  // Predicated region
  $region6: #{positional_encoding_forward.1} parent=0 // pred_check
    _
  $region7: #{positional_encoding_forward.1} parent=0 // pred_check_branch
    %10 = sbr.rel (0) target = $region9
  $region8: #{positional_encoding_forward.1} parent=0 // pred_region
    _
  $region9: #{positional_encoding_forward.1} parent=0 // pred_fallthru
    _
  %v11 = vld [vmem:[%s1] sm:$0xff]
  %v12 = vld [vmem:[%s0] sm:$0xff]
  %v13 = vadd.f32 %v12, %v11
  %vm14 = vcmask 261120
  %15 = vst.msk [vmem:[%s2] sm:$0xff] %vm14, %v13
  %v16 = vld [vmem:[%s0] sm:$0xff]
  %18 = vrot.lane.b32.xlu0 %v11, 32
  %v19 = vpop.permute.xlu0 %18
  %v21 = vadd.f32 %v16, %v19
  %vm22 = vcmask 523520
  %23 = vst.msk [vmem:[%s2] sm:$0xff] %vm22, %v21
  // Predicated region
  $region10: #{positional_encoding_forward.1} parent=0 // pred_check
    _
  $region11: #{positional_encoding_forward.1} parent=0 // pred_check_branch
    %25 = sbr.rel (0) target = $region13
  $region12: #{positional_encoding_forward.1} parent=0 // pred_region
    _
  $region13: #{positional_encoding_forward.1} parent=0 // pred_fallthru
    _
  // Predicated region
  $region14: #{positional_encoding_forward.1} parent=0 // pred_check
    _
  $region15: #{positional_encoding_forward.1} parent=0 // pred_check_branch
    %27 = sbr.rel (0) target = $region17
  $region16: #{positional_encoding_forward.1} parent=0 // pred_region
    _
  $region17: #{positional_encoding_forward.1} parent=0 // pred_fallthru
    _

</llo_original>
